<compile_context>
chip_gen: v5e
topology: v5e:2x2
jax: 0.10.0
libtpu: 0.0.40
codegen_flags: <defaults>
</compile_context>

<pallas_src>
import functools

import jax
import jax.numpy as jnp
from jax.experimental import pallas as pl
from jax.experimental.pallas import tpu as pltpu

LANE = 128
DEFAULT_MAX_TILE_ROWS = 2048   # 2048 x 128 f32 = 1 MiB per plane per grid step


def _reg_loss_kernel(ref_ref, src_ref, out_ref, *, tile_rows, tn, rows, n_batch,
                     n_chunks, inner, P, needs_row_mask, needs_batch_mask):
    """Fused BGR->grayscale + |.| + partial-sum kernel.

    ref_ref : (tn, 3, tile_rows, 128)  reference block (B, G, R planes), native dtype
    src_ref : (tn, tile_rows, 128)     source grayscale block, native dtype
    out_ref : (1, 8, 128) f32          partial-sum accumulator, resident across
                                       the inner (reduction) grid axis.
    """
    i = pl.program_id(0)   # outer: batch-chunk x row-split (parallel)
    j = pl.program_id(1)   # inner: row blocks (arbitrary / reduction)

    @pl.when(j == 0)
    def _():
        out_ref[...] = jnp.zeros_like(out_ref)

    # Load in the native HBM dtype, cast to f32 in VMEM (free VPU work).
    b = ref_ref[:, 0].astype(jnp.float32)
    g = ref_ref[:, 1].astype(jnp.float32)
    r = ref_ref[:, 2].astype(jnp.float32)
    # The BGR->RGB swap is implicit in which plane receives which grayscale weight.
    gs = 0.2989 * r + 0.587 * g + 0.114 * b
    diff = jnp.abs(gs - src_ref[...].astype(jnp.float32))      # (tn, tile_rows, 128)

    def accumulate(d):
        s = d.sum(axis=0)                                       # (tile_rows, 128)
        if tile_rows % 8 == 0:
            # Layout-preserving fold onto the (8,128) vreg partial (pure VPU adds).
            out_ref[...] += s.reshape(-1, 8, LANE).sum(axis=0)[None]
        else:
            # Tiny non-8-aligned tiles: sublane-reduce into row 0 of the partial.
            out_ref[0, 0:1, :] += s.sum(axis=0, keepdims=True)

    if not (needs_row_mask or needs_batch_mask):
        accumulate(diff)
        return

    p = (i % P) if P > 1 else 0
    bc = (i // P) if P > 1 else i
    rb_logical = p * inner + j                                  # unclamped row-block idx

    conds = []
    if needs_row_mask:
        conds.append((rb_logical + 1) * tile_rows > rows)       # partial / duplicated block
    if needs_batch_mask:
        conds.append(bc == n_chunks - 1)                        # partial batch chunk
    is_tail = functools.reduce(jnp.logical_or, conds)

    @pl.when(is_tail)
    def _():
        d = diff
        if needs_row_mask:
            row = (jax.lax.broadcasted_iota(jnp.int32, d.shape, 1)
                   + rb_logical * tile_rows)
            d = jnp.where(row < rows, d, 0.0)
        if needs_batch_mask:
            bi = jax.lax.broadcasted_iota(jnp.int32, d.shape, 0) + bc * tn
            d = jnp.where(bi < n_batch, d, 0.0)
        accumulate(d)

    @pl.when(jnp.logical_not(is_tail))
    def _():
        accumulate(diff)


@functools.partial(jax.jit, static_argnames=("max_tile_rows",))
def reference_regularization_loss(reference_bgr, source_gs, *,
                                  max_tile_rows=DEFAULT_MAX_TILE_ROWS):
    """reference_bgr: (N, 3, H, W) ; source_gs: (N, 1, H, W). Any float (or int) dtype."""
    n, c, h, w = reference_bgr.shape
    assert c == 3
    assert source_gs.shape == (n, 1, h, w)

    hw = h * w
    total = n * hw
    rows = hw // LANE            # full 128-lane rows
    tail = hw - rows * LANE

    if tail == 0:
        # Free reshapes: element order unchanged, no HBM copy.
        ref4 = reference_bgr.reshape(n, 3, rows, LANE)
        src3 = source_gs.reshape(n, rows, LANE)
        tail_sum = jnp.float32(0.0)
    else:
        # Uncommon ragged case: run the kernel on the 128-aligned prefix and the
        # tiny (<128 elems/image) tail in plain JAX. (The prefix slice still
        # costs one copy, but avoids padding+re-reading BOTH tensors.)
        main = rows * LANE
        flat_ref = reference_bgr.reshape(n, 3, hw)
        flat_src = source_gs.reshape(n, 1, hw)
        if rows > 0:
            ref4 = flat_ref[:, :, :main].reshape(n, 3, rows, LANE)
            src3 = flat_src[:, :, :main].reshape(n, rows, LANE)
        tref = flat_ref[:, :, main:].astype(jnp.float32)
        tsrc = flat_src[:, 0, main:].astype(jnp.float32)
        tgs = 0.2989 * tref[:, 2] + 0.587 * tref[:, 1] + 0.114 * tref[:, 0]
        tail_sum = jnp.sum(jnp.abs(tgs - tsrc))

    if rows == 0:                 # entire image fits in the tail
        return tail_sum / jnp.float32(total)

    max_tile_rows = max(8, (max_tile_rows // 8) * 8)   # keep sublane-aligned

    if rows >= max_tile_rows:
        tile_rows = max_tile_rows          # multiple of 8 -> always a legal block
        tn = 1
    else:
        tile_rows = rows                   # full extent -> always a legal block
        # Small images: block several batch elements per grid step so per-step
        # DMAs stay large; tn need not divide N (masked batch tail in-kernel).
        tn = min(n, max(1, max_tile_rows // rows))

    n_chunks = pl.cdiv(n, tn)
    num_inner = pl.cdiv(rows, tile_rows)

    # v7x has 2 TensorCores: make sure the parallel axis has even extent by
    # splitting the row-reduction axis 2-way when n_chunks is odd (esp. N==1).
    P = 2 if (n_chunks % 2 == 1 and num_inner >= 2) else 1
    inner = pl.cdiv(num_inner, P)
    clamp = (P * inner) > num_inner

    needs_row_mask = (P * inner * tile_rows) > rows
    needs_batch_mask = (n % tn) != 0

    def _rb(i, j):
        rb = (i % P) * inner + j if P > 1 else j
        if clamp:
            rb = jnp.minimum(rb, num_inner - 1)   # overshoot blocks re-read, masked to 0
        return rb

    def _bc(i):
        return (i // P) if P > 1 else i

    ref_spec = pl.BlockSpec((tn, 3, tile_rows, LANE),
                            lambda i, j: (_bc(i), 0, _rb(i, j), 0))
    src_spec = pl.BlockSpec((tn, tile_rows, LANE),
                            lambda i, j: (_bc(i), _rb(i, j), 0))
    out_spec = pl.BlockSpec((1, 8, LANE), lambda i, j: (i, 0, 0))
    out_shape = jax.ShapeDtypeStruct((n_chunks * P, 8, LANE), jnp.float32)

    kernel = functools.partial(
        _reg_loss_kernel, tile_rows=tile_rows, tn=tn, rows=rows, n_batch=n,
        n_chunks=n_chunks, inner=inner, P=P,
        needs_row_mask=needs_row_mask, needs_batch_mask=needs_batch_mask)

    partials = pl.pallas_call(
        kernel,
        out_shape=out_shape,
        grid=(n_chunks * P, inner),
        in_specs=[ref_spec, src_spec],
        out_specs=out_spec,
        compiler_params=pltpu.CompilerParams(
            dimension_semantics=("parallel", "arbitrary"),
            vmem_limit_bytes=32 * 1024 * 1024),
    )(ref4, src3)

    return (jnp.sum(partials) + tail_sum) / jnp.float32(total)


def _reference_impl(reference_bgr, source_gs):
    """Pure-JAX reference for validation."""
    ref = reference_bgr.astype(jnp.float32)
    src = source_gs.astype(jnp.float32)
    gs = 0.2989 * ref[:, 2] + 0.587 * ref[:, 1] + 0.114 * ref[:, 0]
    return jnp.mean(jnp.abs(gs[:, None] - src))


if __name__ == "__main__":
    master = jax.random.PRNGKey(0)

    def run_case(n, h, w, key, dtype=jnp.float32, **kw):
        k1, k2 = jax.random.split(key)
        ref_bgr = jax.random.uniform(k1, (n, 3, h, w), dtype=jnp.float32).astype(dtype)
        src_gs = jax.random.uniform(k2, (n, 1, h, w), dtype=jnp.float32).astype(dtype)
        out = reference_regularization_loss(ref_bgr, src_gs, **kw)
        out = jax.block_until_ready(out)
        expect = _reference_impl(ref_bgr, src_gs)
        assert jnp.allclose(out, expect, rtol=3e-5, atol=1e-6), (n, h, w, dtype, out, expect)
        return out

    keys = jax.random.split(master, 6)
    run_case(2, 16, 16, keys[0])                       # tiny: tn=2, non-8-aligned accumulate path
    run_case(2, 64, 64, keys[1], dtype=jnp.bfloat16)   # bf16 input, in-kernel cast, (8,128) fold
    run_case(5, 16, 16, keys[2], max_tile_rows=8)      # tn=4 does not divide N=5 -> batch tail mask
    run_case(1, 80, 80, keys[3], max_tile_rows=8)      # N=1 -> 2-way row split + clamp + row mask
    run_case(2, 30, 30, keys[4])                       # hw % 128 != 0 -> kernel prefix + JAX tail
    run_case(1, 512, 768, keys[5])                     # large image, N=1: parallel row split, fold
    print("KERNEL_OK")
</pallas_src>

<mosaic_0001>
module attributes {stable_mosaic.version = 11 : i64} {
  func.func @_reg_loss_kernel(%arg0: i32, %arg1: i32, %arg2: memref<2x3x2x128xf32, #tpu.memory_space<vmem>>, %arg3: memref<2x2x128xf32, #tpu.memory_space<vmem>>, %arg4: memref<1x8x128xf32, #tpu.memory_space<vmem>>) attributes {dimension_semantics = [#tpu.dimension_semantics<parallel>, #tpu.dimension_semantics<arbitrary>], iteration_bounds = array<i64: 1, 1>, scalar_prefetch = 0 : i64, scratch_operands = 0 : i64, tpu.core_type = #tpu.core_type<tc>, window_params = [{transform_indices = @transform_0, window_bounds = array<i64: 2, 3, 2, 128>}, {transform_indices = @transform_1, window_bounds = array<i64: 2, 2, 128>}, {transform_indices = @transform_2, window_bounds = array<i64: 1, 8, 128>}]} {
    %c0_i32 = arith.constant 0 : i32
    %0 = arith.cmpi eq, %arg1, %c0_i32 : i32
    %1 = arith.extui %0 : i1 to i32
    %c0_i32_0 = arith.constant 0 : i32
    %2 = arith.cmpi ne, %1, %c0_i32_0 : i32
    scf.if %2 {
      %cst_23 = arith.constant 0.000000e+00 : f32
      %29 = vector.broadcast %cst_23 : f32 to vector<1x8x128xf32>
      %c0_24 = arith.constant 0 : index
      %c0_25 = arith.constant 0 : index
      %c0_26 = arith.constant 0 : index
      %30 = vector.load %arg4[%c0_24, %c0_25, %c0_26] : memref<1x8x128xf32, #tpu.memory_space<vmem>>, vector<1x8x128xf32>
      tpu.vector_store %arg4[%c0_24, %c0_25, %c0_26], %29 {strides = array<i32>} : memref<1x8x128xf32, #tpu.memory_space<vmem>>, vector<1x8x128xf32>,
    } else {
    }
    %c0 = arith.constant 0 : index
    %c0_1 = arith.constant 0 : index
    %c0_2 = arith.constant 0 : index
    %c0_3 = arith.constant 0 : index
    %3 = vector.load %arg2[%c0, %c0_1, %c0_2, %c0_3] : memref<2x3x2x128xf32, #tpu.memory_space<vmem>>, vector<2x1x2x128xf32>
    %4 = vector.shape_cast %3 : vector<2x1x2x128xf32> to vector<2x2x128xf32>
    %c0_4 = arith.constant 0 : index
    %c1 = arith.constant 1 : index
    %c0_5 = arith.constant 0 : index
    %c0_6 = arith.constant 0 : index
    %5 = vector.load %arg2[%c0_4, %c1, %c0_5, %c0_6] : memref<2x3x2x128xf32, #tpu.memory_space<vmem>>, vector<2x1x2x128xf32>
    %6 = vector.shape_cast %5 : vector<2x1x2x128xf32> to vector<2x2x128xf32>
    %c0_7 = arith.constant 0 : index
    %c2 = arith.constant 2 : index
    %c0_8 = arith.constant 0 : index
    %c0_9 = arith.constant 0 : index
    %7 = vector.load %arg2[%c0_7, %c2, %c0_8, %c0_9] : memref<2x3x2x128xf32, #tpu.memory_space<vmem>>, vector<2x1x2x128xf32>
    %8 = vector.shape_cast %7 : vector<2x1x2x128xf32> to vector<2x2x128xf32>
    %cst = arith.constant 2.989000e-01 : f32
    %9 = vector.broadcast %cst : f32 to vector<2x2x128xf32>
    %10 = arith.mulf %9, %8 : vector<2x2x128xf32>
    %cst_10 = arith.constant 5.870000e-01 : f32
    %11 = vector.broadcast %cst_10 : f32 to vector<2x2x128xf32>
    %12 = arith.mulf %11, %6 : vector<2x2x128xf32>
    %13 = arith.addf %10, %12 : vector<2x2x128xf32>
    %cst_11 = arith.constant 1.140000e-01 : f32
    %14 = vector.broadcast %cst_11 : f32 to vector<2x2x128xf32>
    %15 = arith.mulf %14, %4 : vector<2x2x128xf32>
    %16 = arith.addf %13, %15 : vector<2x2x128xf32>
    %c0_12 = arith.constant 0 : index
    %c0_13 = arith.constant 0 : index
    %c0_14 = arith.constant 0 : index
    %17 = vector.load %arg3[%c0_12, %c0_13, %c0_14] : memref<2x2x128xf32, #tpu.memory_space<vmem>>, vector<2x2x128xf32>
    %18 = arith.subf %16, %17 : vector<2x2x128xf32>
    %19 = math.absf %18 : vector<2x2x128xf32>
    %cst_15 = arith.constant dense<0.000000e+00> : vector<2x128xf32>
    %20 = vector.multi_reduction <add>, %19, %cst_15 [0] : vector<2x2x128xf32> to vector<2x128xf32>
    %c0_16 = arith.constant 0 : index
    %c0_17 = arith.constant 0 : index
    %c0_18 = arith.constant 0 : index
    %21 = vector.load %arg4[%c0_16, %c0_17, %c0_18] : memref<1x8x128xf32, #tpu.memory_space<vmem>>, vector<1x1x128xf32>
    %22 = vector.shape_cast %21 : vector<1x1x128xf32> to vector<1x128xf32>
    %cst_19 = arith.constant dense<0.000000e+00> : vector<128xf32>
    %23 = vector.multi_reduction <add>, %20, %cst_19 [0] : vector<2x128xf32> to vector<128xf32>
    %24 = vector.shape_cast %23 : vector<128xf32> to vector<1x128xf32>
    %25 = arith.addf %22, %24 : vector<1x128xf32>
    %c0_20 = arith.constant 0 : index
    %c0_21 = arith.constant 0 : index
    %c0_22 = arith.constant 0 : index
    %26 = vector.load %arg4[%c0_20, %c0_21, %c0_22] : memref<1x8x128xf32, #tpu.memory_space<vmem>>, vector<1x1x128xf32>
    %27 = vector.shape_cast %26 : vector<1x1x128xf32> to vector<1x128xf32>
    %28 = vector.shape_cast %25 : vector<1x128xf32> to vector<1x1x128xf32>
    tpu.vector_store %arg4[%c0_20, %c0_21, %c0_22], %28 {strides = array<i32>} : memref<1x8x128xf32, #tpu.memory_space<vmem>>, vector<1x1x128xf32>,
    return
  }
  func.func @transform_0(%arg0: i32, %arg1: i32) -> (i32, i32, i32, i32) {
    %c0_i32 = arith.constant 0 : i32
    %c0_i32_0 = arith.constant 0 : i32
    %c0_i32_1 = arith.constant 0 : i32
    return %arg0, %c0_i32, %arg1, %c0_i32_0 : i32, i32, i32, i32
  }
  func.func @transform_1(%arg0: i32, %arg1: i32) -> (i32, i32, i32) {
    %c0_i32 = arith.constant 0 : i32
    %c0_i32_0 = arith.constant 0 : i32
    return %arg0, %arg1, %c0_i32 : i32, i32, i32
  }
  func.func @transform_2(%arg0: i32, %arg1: i32) -> (i32, i32, i32) {
    %c0_i32 = arith.constant 0 : i32
    %c0_i32_0 = arith.constant 0 : i32
    %c0_i32_1 = arith.constant 0 : i32
    return %arg0, %c0_i32, %c0_i32_0 : i32, i32, i32
  }
}

</mosaic_0001>

<llo_original>
// kernel: reference_regularization_loss.1
$region0: #{reference_regularization_loss.1}
  #allocation0 [shape = 'u32[]', space=smem, size = 0x4, offset = 0x4, fixed_abs, tag = 'smem constant byte address 0x4 - core index']
  #allocation1 [shape = 'u32[72,128]{1,0:T(1,128)}', space=vmem, size = 0x9000, scoped, tag = 'internal scratch']
  %s0 = inlined_call_operand.vmem [shape: f32[2,3,2,128], index: 0, kind: input, shape index: {}]
  %s1 = inlined_call_operand.vmem [shape: f32[2,2,128], index: 1, kind: input, shape index: {}]
  %s2 = inlined_call_operand.vmem [shape: f32[1,8,128], index: 2, kind: output, shape index: {}]
  %s3 = sld [smem:[#allocation0]]
  $region22: #{reference_regularization_loss.1} parent=0
    _
  %s5 = ssub.s32 1, %s3
  %s6 = scalar_select 0, %s5, %s3
  // Predicated region
  $region2: #{reference_regularization_loss.1} parent=0 // pred_check
    _
  $region3: #{reference_regularization_loss.1} parent=0 // pred_check_branch
    %8 = sbr.rel (0) target = $region5
  $region4: #{reference_regularization_loss.1} parent=0 // pred_region
    _
  $region5: #{reference_regularization_loss.1} parent=0 // pred_fallthru
    _
  // Predicated region
  $region6: #{reference_regularization_loss.1} parent=0 // pred_check
    _
  $region7: #{reference_regularization_loss.1} parent=0 // pred_check_branch
    %10 = sbr.rel (0) target = $region9
  $region8: #{reference_regularization_loss.1} parent=0 // pred_region
    _
  $region9: #{reference_regularization_loss.1} parent=0 // pred_fallthru
    _
  %p11 = scmp.eq.s32.totalorder 0, 0
  // Predicated region
  $region10: #{reference_regularization_loss.1} parent=0 // pred_check
    %p12 = pneg %p11
  $region11: #{reference_regularization_loss.1} parent=0 // pred_check_branch
    %14 = sbr.rel (%p12) target = $region13
  $region12: #{reference_regularization_loss.1} parent=0 // pred_region
    %15 = vst [vmem:[%s2] sm:$0xff] 0.0
  $region13: #{reference_regularization_loss.1} parent=0 // pred_fallthru
    _
  %v16 = vld [vmem:[%s0] sm:$0x3]
  %v17 = vld [vmem:[%s0 + $0x6] sm:$0x3]
  %s18 = scalar_lea.vmem %s0, 2
  %v19 = vld [vmem:[%s18] sm:$0x3]
  %v20 = vld [vmem:[%s18 + $0x6] sm:$0x3]
  %s21 = scalar_lea.vmem %s0, 4
  %v22 = vld [vmem:[%s21] sm:$0x3]
  %v23 = vld [vmem:[%s21 + $0x6] sm:$0x3]
  %v24 = vmul.f32 %v22, 0.2989
  %v25 = vmul.f32 %v23, 0.2989
  %v26 = vmul.f32 %v19, 0.587
  %v27 = vmul.f32 %v20, 0.587
  %v28 = vadd.f32 %v24, %v26
  %v29 = vadd.f32 %v25, %v27
  %v30 = vmul.f32 %v16, 0.114
  %v31 = vmul.f32 %v17, 0.114
  %v32 = vadd.f32 %v28, %v30
  %v33 = vadd.f32 %v29, %v31
  %v34 = vld [vmem:[%s1] sm:$0x3]
  %v35 = vld [vmem:[%s1 + $0x2] sm:$0x3]
  %v36 = vsub.f32 %v32, %v34
  %v37 = vsub.f32 %v33, %v35
  %v38 = vand.u32 2147483647, %v36
  %v39 = vand.u32 2147483647, %v37
  %vm40 = vcmask 1041408
  %v41 = vsel %vm40, %v38, 0.0
  %v42 = vsel %vm40, %v39, 0.0
  %v43 = vadd.f32 %v41, %v42
  %v44 = vld [vmem:[%s2] sm:$0x1]
  %v45 = vsel %vm40, %v43, 0.0
  %v46 = vrot.slane %v45, 4
  %v47 = vadd.f32 %v45, %v46
  %v48 = vrot.slane %v47, 2
  %v49 = vadd.f32 %v47, %v48
  %v50 = vrot.slane %v49, 1
  %v51 = vadd.f32 %v49, %v50
  %v52 = vadd.f32 %v44, %v51
  %53 = vst [vmem:[%s2] sm:$0x1] %v52
  // Predicated region
  $region14: #{reference_regularization_loss.1} parent=0 // pred_check
    _
  $region15: #{reference_regularization_loss.1} parent=0 // pred_check_branch
    %55 = sbr.rel (0) target = $region17
  $region16: #{reference_regularization_loss.1} parent=0 // pred_region
    _
  $region17: #{reference_regularization_loss.1} parent=0 // pred_fallthru
    _
  // Predicated region
  $region18: #{reference_regularization_loss.1} parent=0 // pred_check
    _
  $region19: #{reference_regularization_loss.1} parent=0 // pred_check_branch
    %57 = sbr.rel (0) target = $region21
  $region20: #{reference_regularization_loss.1} parent=0 // pred_region
    _
  $region21: #{reference_regularization_loss.1} parent=0 // pred_fallthru
    _

</llo_original>
